<compile_context>
chip_gen: v7x
topology: tpu7x:2x2x1
jax: 0.10.0
libtpu: 0.0.40
codegen_flags: <defaults>
</compile_context>

<pallas_src>
import functools
import math

import jax
import jax.numpy as jnp
from jax.experimental import pallas as pl
from jax.experimental.pallas import tpu as pltpu


# ----------------------------------------------------------------------------
# Pallas kernel
# ----------------------------------------------------------------------------
def _rte_kernel(rows_ref, emb_ref, w_ref, b_ref, x_ref, o_ref, e_ref, te_ref,
                *, group):
    i = pl.program_id(0)          # slab-group index (group = slabs per step)

    # te depends only on the slab group -> compute once per group (first row
    # tile) into VMEM scratch and reuse for the remaining row tiles.
    @pl.when(pl.program_id(1) == 0)
    def _():
        # Gather this group's embedding rows from the VMEM-resident table,
        # driven by the scalar-prefetched delays sitting in SMEM.
        for j in range(group):                              # tiny static unroll
            r = rows_ref[i * group + j]                     # dts[b,l] * ratio
            e_ref[pl.ds(j, 1), :] = emb_ref[pl.ds(r, 1), :]
        te_ref[...] = (
            jnp.dot(e_ref[...], w_ref[...], preferred_element_type=jnp.float32)
            + b_ref[...])                                   # (G, P)

    te = te_ref[...]                                        # (G, P) f32
    # x block is (G, Rt, P); each slab's te row broadcasts over its Rt rows.
    o_ref[...] = (x_ref[...] + te[:, None, :]).astype(o_ref.dtype)


# ----------------------------------------------------------------------------
# tiling helpers
# ----------------------------------------------------------------------------
def _plan_lane_packing(H, W, C):
    """Return (P, reps, c_pad): lane width, pixels packed per 128-lane row,
    and channel count after padding (== C when no padding is needed)."""
    HW = H * W
    if C % 128 == 0:
        return C, 1, C                      # already lane-dense
    if 128 % C == 0 and HW % (128 // C) == 0:
        return 128, 128 // C, C             # pack several pixels per lane row
    # Fallback: pad channels to the next 128-multiple so stores stay
    # full-width vst (one pad/slice pair in the wrapper).
    c_pad = ((C + 127) // 128) * 128
    return c_pad, 1, c_pad


def _pick_row_tile(R, P, itemsize, max_bytes):
    """Largest divisor of R that is a sublane multiple (or R itself) whose
    (Rt, P) tile stays under max_bytes."""
    sub = max(8, 32 // itemsize)            # 8 for f32, 16 for bf16, 32 for i8
    cap = max(sub, max_bytes // (P * itemsize))
    t = min(R, cap)
    while t > sub and (R % t != 0 or t % sub != 0):
        t -= 1
    if R % t != 0 or (t % sub != 0 and t != R):
        t = R
    return t


def _plan_tiling(BL, R, P, itemsize, max_block_bytes=2 << 20):
    """Pick (G, Rt): slabs per grid step, rows per tile.

    Prefer 2 grid steps along the slab axis (even split for v7x's 2 TCs);
    otherwise the fewest steps that keep one block <= ~2 MiB (v7x-safe with
    double-buffered in+out against its 64 MiB VMEM)."""
    slab_bytes = R * P * itemsize
    if BL % 2 == 0 and (BL // 2) * slab_bytes <= max_block_bytes:
        return BL // 2, R
    if slab_bytes <= max_block_bytes:
        g = max(d for d in range(1, BL + 1)
                if BL % d == 0 and d * slab_bytes <= max_block_bytes)
        return g, R
    return 1, _pick_row_tile(R, P, itemsize, max_block_bytes)


# ----------------------------------------------------------------------------
# forward wrapper
# ----------------------------------------------------------------------------
def rte_forward(x, dts, params, *, rte_ratio=2):
    """x: (B, L, H, W, C) float32, dts: (B, L) int -> (B, L, H, W, C)."""
    B, L, H, W, C = x.shape
    emb = params["emb"]                            # (max_len, C) frozen table
    max_len = emb.shape[0]
    w = params["lin_w"].T                          # torch (out, in) -> (in, out)
    b = params["lin_b"].reshape(1, C)

    P, reps, c_pad = _plan_lane_packing(H, W, C)
    pad = c_pad - C
    if pad:
        x = jnp.pad(x, ((0, 0),) * 4 + ((0, pad),))
        w = jnp.pad(w, ((0, 0), (0, pad)))
        b = jnp.pad(b, ((0, 0), (0, pad)))
    if reps > 1:
        w = jnp.tile(w, (1, reps))                 # (C, 128)
        b = jnp.tile(b, (1, reps))                 # (1, 128)

    BL = B * L
    R = (H * W * c_pad) // P                       # 128-lane rows per (b,l) slab
    itemsize = jnp.dtype(x.dtype).itemsize
    xv = x.reshape(BL, R, P)                       # contiguous lane-dense view

    G, Rt = _plan_tiling(BL, R, P, itemsize)
    grid = (BL // G, R // Rt)

    # Clamp so a bad delay can never trigger an out-of-bounds table read.
    rows = jnp.clip(dts.reshape(-1).astype(jnp.int32) * rte_ratio, 0, max_len - 1)

    flops = 2 * BL * C * P + BL * R * P
    bytes_accessed = 2 * BL * R * P * itemsize + int(emb.size) * 4 + int(w.size) * 4

    out = pl.pallas_call(
        functools.partial(_rte_kernel, group=G),
        out_shape=jax.ShapeDtypeStruct((BL, R, P), x.dtype),
        grid_spec=pltpu.PrefetchScalarGridSpec(
            num_scalar_prefetch=1,
            grid=grid,
            in_specs=[
                # VMEM-resident sinusoid table (constant block -> fetched once)
                pl.BlockSpec((max_len, C), lambda i, t, rws: (0, 0)),
                # resident linear weight / bias (pre-tiled/padded to lane width)
                pl.BlockSpec((C, P), lambda i, t, rws: (0, 0)),
                pl.BlockSpec((1, P), lambda i, t, rws: (0, 0)),
                # streaming feature slabs
                pl.BlockSpec((G, Rt, P), lambda i, t, rws: (i, t, 0)),
            ],
            out_specs=pl.BlockSpec((G, Rt, P), lambda i, t, rws: (i, t, 0)),
            scratch_shapes=[
                pltpu.VMEM((G, C), jnp.float32),   # gathered embedding rows
                pltpu.VMEM((G, P), jnp.float32),   # te, reused across row tiles
            ],
        ),
        compiler_params=pltpu.CompilerParams(
            dimension_semantics=("parallel", "arbitrary"),
            vmem_limit_bytes=32 * 1024 * 1024),
        cost_estimate=pl.CostEstimate(flops=flops, transcendentals=0,
                                      bytes_accessed=bytes_accessed),
    )(rows, emb, w, b, xv)

    out = out.reshape(B, L, H, W, c_pad)
    return out[..., :C] if pad else out


# ----------------------------------------------------------------------------
# deterministic parameters (mirrors RelTemporalEncoding.__init__)
# ----------------------------------------------------------------------------
def init_rte_params(key, dim=32, max_len=100):
    position = jnp.arange(0.0, max_len)[:, None]
    div_term = jnp.exp(jnp.arange(0, dim, 2, dtype=jnp.float32) *
                       (-(math.log(10000.0) / dim)))
    emb = jnp.zeros((max_len, dim), jnp.float32)
    emb = emb.at[:, 0::2].set(jnp.sin(position * div_term) / math.sqrt(dim))
    emb = emb.at[:, 1::2].set(jnp.cos(position * div_term) / math.sqrt(dim))
    kw, kb = jax.random.split(key)
    lin_w = 0.1 * jax.random.normal(kw, (dim, dim), jnp.float32)   # torch (out, in)
    lin_b = 0.1 * jax.random.normal(kb, (dim,), jnp.float32)
    # NOTE: the reference module defines dropout=0.2 but never applies it in
    # forward, so there is nothing to translate for it.
    return {"emb": emb, "lin_w": lin_w, "lin_b": lin_b}


def rte_reference(x, dts, params, *, rte_ratio=2):
    rows = params["emb"][dts * rte_ratio]                                    # (B, L, C)
    te = jnp.dot(rows, params["lin_w"].T,
                 precision=jax.lax.Precision.HIGHEST) + params["lin_b"]      # (B, L, C)
    return x + te[:, :, None, None, :]


# ----------------------------------------------------------------------------
if __name__ == "__main__":
    key = jax.random.PRNGKey(0)
    k_param, k_x = jax.random.split(key)

    B, L, H, W, C = 2, 3, 16, 16, 32
    params = init_rte_params(k_param, dim=C)

    x = jax.random.normal(k_x, (B, L, H, W, C), jnp.float32)
    dts = jnp.array([[0, 1, 2], [1, 0, 3]], jnp.int32)      # per-cav time delays

    fwd = jax.jit(functools.partial(rte_forward, rte_ratio=2))
    out = jax.block_until_ready(fwd(x, dts, params))

    ref = rte_reference(x, dts, params, rte_ratio=2)
    assert out.shape == (B, L, H, W, C), out.shape
    assert bool(jnp.all(jnp.isfinite(out)))
    err = float(jnp.max(jnp.abs(out - ref)))
    assert err < 3e-3, err
    print("KERNEL_OK")
</pallas_src>

<mosaic_0001>
module attributes {stable_mosaic.version = 11 : i64} {
  func.func @_rte_kernel(%arg0: i32, %arg1: i32, %arg2: memref<6xi32, #tpu.memory_space<smem>>, %arg3: memref<100x32xf32, #tpu.memory_space<vmem>>, %arg4: memref<32x128xf32, #tpu.memory_space<vmem>>, %arg5: memref<1x128xf32, #tpu.memory_space<vmem>>, %arg6: memref<3x64x128xf32, #tpu.memory_space<vmem>>, %arg7: memref<3x64x128xf32, #tpu.memory_space<vmem>>, %arg8: memref<3x32xf32, #tpu.memory_space<vmem>>, %arg9: memref<3x128xf32, #tpu.memory_space<vmem>>) attributes {dimension_semantics = [#tpu.dimension_semantics<parallel>, #tpu.dimension_semantics<arbitrary>], iteration_bounds = array<i64: 2, 1>, scalar_prefetch = 1 : i64, scratch_operands = 2 : i64, tpu.core_type = #tpu.core_type<tc>, window_params = [{pipeline_mode = #tpu.pipeline_mode<synchronous>, transform_indices = @transform_0, window_bounds = array<i64: 100, 32>}, {pipeline_mode = #tpu.pipeline_mode<synchronous>, transform_indices = @transform_1, window_bounds = array<i64: 32, 128>}, {pipeline_mode = #tpu.pipeline_mode<synchronous>, transform_indices = @transform_2, window_bounds = array<i64: 1, 128>}, {transform_indices = @transform_3, window_bounds = array<i64: 3, 64, 128>}, {transform_indices = @transform_4, window_bounds = array<i64: 3, 64, 128>}]} {
    %c0_i32 = arith.constant 0 : i32
    %0 = arith.cmpi eq, %arg1, %c0_i32 : i32
    %1 = arith.extui %0 : i1 to i32
    %c0_i32_0 = arith.constant 0 : i32
    %2 = arith.cmpi ne, %1, %c0_i32_0 : i32
    scf.if %2 {
      %c3_i32 = arith.constant 3 : i32
      %9 = arith.muli %arg0, %c3_i32 : i32
      %c0_i32_8 = arith.constant 0 : i32
      %10 = arith.addi %9, %c0_i32_8 : i32
      %11 = arith.index_cast %10 : i32 to index
      %12 = memref.load %arg2[%11] : memref<6xi32, #tpu.memory_space<smem>>
      %13 = arith.index_cast %12 : i32 to index
      %c0_9 = arith.constant 0 : index
      %14 = vector.load %arg3[%13, %c0_9] : memref<100x32xf32, #tpu.memory_space<vmem>>, vector<1x32xf32>
      %c0_10 = arith.constant 0 : index
      %c0_11 = arith.constant 0 : index
      %15 = vector.load %arg8[%c0_10, %c0_11] : memref<3x32xf32, #tpu.memory_space<vmem>>, vector<1x32xf32>
      tpu.vector_store %arg8[%c0_10, %c0_11], %14 {strides = array<i32>} : memref<3x32xf32, #tpu.memory_space<vmem>>, vector<1x32xf32>,
      %c3_i32_12 = arith.constant 3 : i32
      %16 = arith.muli %arg0, %c3_i32_12 : i32
      %c1_i32 = arith.constant 1 : i32
      %17 = arith.addi %16, %c1_i32 : i32
      %18 = arith.index_cast %17 : i32 to index
      %19 = memref.load %arg2[%18] : memref<6xi32, #tpu.memory_space<smem>>
      %20 = arith.index_cast %19 : i32 to index
      %c0_13 = arith.constant 0 : index
      %21 = vector.load %arg3[%20, %c0_13] : memref<100x32xf32, #tpu.memory_space<vmem>>, vector<1x32xf32>
      %c1 = arith.constant 1 : index
      %c0_14 = arith.constant 0 : index
      %22 = vector.load %arg8[%c1, %c0_14] : memref<3x32xf32, #tpu.memory_space<vmem>>, vector<1x32xf32>
      tpu.vector_store %arg8[%c1, %c0_14], %21 {strides = array<i32>} : memref<3x32xf32, #tpu.memory_space<vmem>>, vector<1x32xf32>,
      %c3_i32_15 = arith.constant 3 : i32
      %23 = arith.muli %arg0, %c3_i32_15 : i32
      %c2_i32 = arith.constant 2 : i32
      %24 = arith.addi %23, %c2_i32 : i32
      %25 = arith.index_cast %24 : i32 to index
      %26 = memref.load %arg2[%25] : memref<6xi32, #tpu.memory_space<smem>>
      %27 = arith.index_cast %26 : i32 to index
      %c0_16 = arith.constant 0 : index
      %28 = vector.load %arg3[%27, %c0_16] : memref<100x32xf32, #tpu.memory_space<vmem>>, vector<1x32xf32>
      %c2 = arith.constant 2 : index
      %c0_17 = arith.constant 0 : index
      %29 = vector.load %arg8[%c2, %c0_17] : memref<3x32xf32, #tpu.memory_space<vmem>>, vector<1x32xf32>
      tpu.vector_store %arg8[%c2, %c0_17], %28 {strides = array<i32>} : memref<3x32xf32, #tpu.memory_space<vmem>>, vector<1x32xf32>,
      %c0_18 = arith.constant 0 : index
      %c0_19 = arith.constant 0 : index
      %30 = vector.load %arg8[%c0_18, %c0_19] : memref<3x32xf32, #tpu.memory_space<vmem>>, vector<3x32xf32>
      %c0_20 = arith.constant 0 : index
      %c0_21 = arith.constant 0 : index
      %31 = vector.load %arg4[%c0_20, %c0_21] : memref<32x128xf32, #tpu.memory_space<vmem>>, vector<32x128xf32>
      %cst = arith.constant dense<0.000000e+00> : vector<3x128xf32>
      %32 = tpu.matmul %30, %31, %cst {dimension_numbers = #tpu.dot_dimension_numbers<[1], [0], [0], [1], [0, 0, 1, 1], [], []>} : vector<3x32xf32>, vector<32x128xf32>, vector<3x128xf32> -> vector<3x128xf32>
      %c0_22 = arith.constant 0 : index
      %c0_23 = arith.constant 0 : index
      %33 = vector.load %arg5[%c0_22, %c0_23] : memref<1x128xf32, #tpu.memory_space<vmem>>, vector<1x128xf32>
      %34 = vector.broadcast %33 : vector<1x128xf32> to vector<3x128xf32>
      %35 = arith.addf %32, %34 : vector<3x128xf32>
      %c0_24 = arith.constant 0 : index
      %c0_25 = arith.constant 0 : index
      %36 = vector.load %arg9[%c0_24, %c0_25] : memref<3x128xf32, #tpu.memory_space<vmem>>, vector<3x128xf32>
      tpu.vector_store %arg9[%c0_24, %c0_25], %35 {strides = array<i32>} : memref<3x128xf32, #tpu.memory_space<vmem>>, vector<3x128xf32>,
    } else {
    }
    %c0 = arith.constant 0 : index
    %c0_1 = arith.constant 0 : index
    %3 = vector.load %arg9[%c0, %c0_1] : memref<3x128xf32, #tpu.memory_space<vmem>>, vector<3x128xf32>
    %c0_2 = arith.constant 0 : index
    %c0_3 = arith.constant 0 : index
    %c0_4 = arith.constant 0 : index
    %4 = vector.load %arg6[%c0_2, %c0_3, %c0_4] : memref<3x64x128xf32, #tpu.memory_space<vmem>>, vector<3x64x128xf32>
    %5 = vector.shape_cast %3 : vector<3x128xf32> to vector<3x1x128xf32>
    %6 = vector.broadcast %5 : vector<3x1x128xf32> to vector<3x64x128xf32>
    %7 = arith.addf %4, %6 : vector<3x64x128xf32>
    %c0_5 = arith.constant 0 : index
    %c0_6 = arith.constant 0 : index
    %c0_7 = arith.constant 0 : index
    %8 = vector.load %arg7[%c0_5, %c0_6, %c0_7] : memref<3x64x128xf32, #tpu.memory_space<vmem>>, vector<3x64x128xf32>
    tpu.vector_store %arg7[%c0_5, %c0_6, %c0_7], %7 {strides = array<i32>} : memref<3x64x128xf32, #tpu.memory_space<vmem>>, vector<3x64x128xf32>,
    return
  }
  func.func @transform_0(%arg0: i32, %arg1: i32, %arg2: memref<6xi32, #tpu.memory_space<smem>>) -> (i32, i32) {
    %c0_i32 = arith.constant 0 : i32
    %c0_i32_0 = arith.constant 0 : i32
    %c0_i32_1 = arith.constant 0 : i32
    return %c0_i32, %c0_i32_0 : i32, i32
  }
  func.func @transform_1(%arg0: i32, %arg1: i32, %arg2: memref<6xi32, #tpu.memory_space<smem>>) -> (i32, i32) {
    %c0_i32 = arith.constant 0 : i32
    %c0_i32_0 = arith.constant 0 : i32
    %c0_i32_1 = arith.constant 0 : i32
    return %c0_i32, %c0_i32_0 : i32, i32
  }
  func.func @transform_2(%arg0: i32, %arg1: i32, %arg2: memref<6xi32, #tpu.memory_space<smem>>) -> (i32, i32) {
    %c0_i32 = arith.constant 0 : i32
    %c0_i32_0 = arith.constant 0 : i32
    %c0_i32_1 = arith.constant 0 : i32
    return %c0_i32, %c0_i32_0 : i32, i32
  }
  func.func @transform_3(%arg0: i32, %arg1: i32, %arg2: memref<6xi32, #tpu.memory_space<smem>>) -> (i32, i32, i32) {
    %c0_i32 = arith.constant 0 : i32
    %c0_i32_0 = arith.constant 0 : i32
    return %arg0, %arg1, %c0_i32 : i32, i32, i32
  }
  func.func @transform_4(%arg0: i32, %arg1: i32, %arg2: memref<6xi32, #tpu.memory_space<smem>>) -> (i32, i32, i32) {
    %c0_i32 = arith.constant 0 : i32
    %c0_i32_0 = arith.constant 0 : i32
    return %arg0, %arg1, %c0_i32 : i32, i32, i32
  }
}

</mosaic_0001>

<llo_original>
// kernel: tile.13
$region0: #{tile.13}
  %s0 = inlined_call_operand.vmem [shape: f32[32,4,32], index: 0, kind: input, shape index: {}]
  %s1 = inlined_call_operand.vmem [shape: f32[32,128], index: 1, kind: output, shape index: {}]
  $region1: #{tile.13} parent=0
    #allocation0 [shape = 'u8[131072]{0}', space=vmem, size = 0x20000, scoped, tag = 'scoped mem for input reshape']
    %s3 = sshllo.u32 0, 4
    %s4 = smul.addr 4, 31
    %s5 = scalar_lea.vmem %s0, %s4
    %v6 = vld [vmem:[%s5] sm:%s3]
    %s7 = scalar_lea.vmem [#allocation0], 248
    %8 = vst [vmem:[%s7] sm:%s3] %v6
    %s9 = smul.addr 4, 30
    %s10 = scalar_lea.vmem %s0, %s9
    %v11 = vld [vmem:[%s10] sm:%s3]
    %s12 = scalar_lea.vmem [#allocation0], 240
    %13 = vst [vmem:[%s12] sm:%s3] %v11
    %s14 = smul.addr 4, 29
    %s15 = scalar_lea.vmem %s0, %s14
    %v16 = vld [vmem:[%s15] sm:%s3]
    %s17 = scalar_lea.vmem [#allocation0], 232
    %18 = vst [vmem:[%s17] sm:%s3] %v16
    %s19 = smul.addr 4, 28
    %s20 = scalar_lea.vmem %s0, %s19
    %v21 = vld [vmem:[%s20] sm:%s3]
    %s22 = scalar_lea.vmem [#allocation0], 224
    %23 = vst [vmem:[%s22] sm:%s3] %v21
    %s24 = smul.addr 4, 27
    %s25 = scalar_lea.vmem %s0, %s24
    %v26 = vld [vmem:[%s25] sm:%s3]
    %s27 = scalar_lea.vmem [#allocation0], 216
    %28 = vst [vmem:[%s27] sm:%s3] %v26
    %s29 = smul.addr 4, 26
    %s30 = scalar_lea.vmem %s0, %s29
    %v31 = vld [vmem:[%s30] sm:%s3]
    %s32 = scalar_lea.vmem [#allocation0], 208
    %33 = vst [vmem:[%s32] sm:%s3] %v31
    %s34 = smul.addr 4, 25
    %s35 = scalar_lea.vmem %s0, %s34
    %v36 = vld [vmem:[%s35] sm:%s3]
    %s37 = scalar_lea.vmem [#allocation0], 200
    %38 = vst [vmem:[%s37] sm:%s3] %v36
    %s39 = smul.addr 4, 24
    %s40 = scalar_lea.vmem %s0, %s39
    %v41 = vld [vmem:[%s40] sm:%s3]
    %s42 = scalar_lea.vmem [#allocation0], 192
    %43 = vst [vmem:[%s42] sm:%s3] %v41
    %s44 = smul.addr 4, 23
    %s45 = scalar_lea.vmem %s0, %s44
    %v46 = vld [vmem:[%s45] sm:%s3]
    %s47 = scalar_lea.vmem [#allocation0], 184
    %48 = vst [vmem:[%s47] sm:%s3] %v46
    %s49 = smul.addr 4, 22
    %s50 = scalar_lea.vmem %s0, %s49
    %v51 = vld [vmem:[%s50] sm:%s3]
    %s52 = scalar_lea.vmem [#allocation0], 176
    %53 = vst [vmem:[%s52] sm:%s3] %v51
    %s54 = smul.addr 4, 21
    %s55 = scalar_lea.vmem %s0, %s54
    %v56 = vld [vmem:[%s55] sm:%s3]
    %s57 = scalar_lea.vmem [#allocation0], 168
    %58 = vst [vmem:[%s57] sm:%s3] %v56
    %s59 = smul.addr 4, 20
    %s60 = scalar_lea.vmem %s0, %s59
    %v61 = vld [vmem:[%s60] sm:%s3]
    %s62 = scalar_lea.vmem [#allocation0], 160
    %63 = vst [vmem:[%s62] sm:%s3] %v61
    %s64 = smul.addr 4, 19
    %s65 = scalar_lea.vmem %s0, %s64
    %v66 = vld [vmem:[%s65] sm:%s3]
    %s67 = scalar_lea.vmem [#allocation0], 152
    %68 = vst [vmem:[%s67] sm:%s3] %v66
    %s69 = smul.addr 4, 18
    %s70 = scalar_lea.vmem %s0, %s69
    %v71 = vld [vmem:[%s70] sm:%s3]
    %s72 = scalar_lea.vmem [#allocation0], 144
    %73 = vst [vmem:[%s72] sm:%s3] %v71
    %s74 = smul.addr 4, 17
    %s75 = scalar_lea.vmem %s0, %s74
    %v76 = vld [vmem:[%s75] sm:%s3]
    %s77 = scalar_lea.vmem [#allocation0], 136
    %78 = vst [vmem:[%s77] sm:%s3] %v76
    %s79 = smul.addr 4, 16
    %s80 = scalar_lea.vmem %s0, %s79
    %v81 = vld [vmem:[%s80] sm:%s3]
    %s82 = scalar_lea.vmem [#allocation0], 128
    %83 = vst [vmem:[%s82] sm:%s3] %v81
    %s84 = smul.addr 4, 15
    %s85 = scalar_lea.vmem %s0, %s84
    %v86 = vld [vmem:[%s85] sm:%s3]
    %s87 = scalar_lea.vmem [#allocation0], 120
    %88 = vst [vmem:[%s87] sm:%s3] %v86
    %s89 = smul.addr 4, 14
    %s90 = scalar_lea.vmem %s0, %s89
    %v91 = vld [vmem:[%s90] sm:%s3]
    %s92 = scalar_lea.vmem [#allocation0], 112
    %93 = vst [vmem:[%s92] sm:%s3] %v91
    %s94 = smul.addr 4, 13
    %s95 = scalar_lea.vmem %s0, %s94
    %v96 = vld [vmem:[%s95] sm:%s3]
    %s97 = scalar_lea.vmem [#allocation0], 104
    %98 = vst [vmem:[%s97] sm:%s3] %v96
    %s99 = smul.addr 4, 12
    %s100 = scalar_lea.vmem %s0, %s99
    %v101 = vld [vmem:[%s100] sm:%s3]
    %s102 = scalar_lea.vmem [#allocation0], 96
    %103 = vst [vmem:[%s102] sm:%s3] %v101
    %s104 = smul.addr 4, 11
    %s105 = scalar_lea.vmem %s0, %s104
    %v106 = vld [vmem:[%s105] sm:%s3]
    %s107 = scalar_lea.vmem [#allocation0], 88
    %108 = vst [vmem:[%s107] sm:%s3] %v106
    %s109 = smul.addr 4, 10
    %s110 = scalar_lea.vmem %s0, %s109
    %v111 = vld [vmem:[%s110] sm:%s3]
    %s112 = scalar_lea.vmem [#allocation0], 80
    %113 = vst [vmem:[%s112] sm:%s3] %v111
    %s114 = smul.addr 4, 9
    %s115 = scalar_lea.vmem %s0, %s114
    %v116 = vld [vmem:[%s115] sm:%s3]
    %s117 = scalar_lea.vmem [#allocation0], 72
    %118 = vst [vmem:[%s117] sm:%s3] %v116
    %s119 = smul.addr 4, 8
    %s120 = scalar_lea.vmem %s0, %s119
    %v121 = vld [vmem:[%s120] sm:%s3]
    %s122 = scalar_lea.vmem [#allocation0], 64
    %123 = vst [vmem:[%s122] sm:%s3] %v121
    %s124 = smul.addr 4, 7
    %s125 = scalar_lea.vmem %s0, %s124
    %v126 = vld [vmem:[%s125] sm:%s3]
    %s127 = scalar_lea.vmem [#allocation0], 56
    %128 = vst [vmem:[%s127] sm:%s3] %v126
    %s129 = smul.addr 4, 6
    %s130 = scalar_lea.vmem %s0, %s129
    %v131 = vld [vmem:[%s130] sm:%s3]
    %s132 = scalar_lea.vmem [#allocation0], 48
    %133 = vst [vmem:[%s132] sm:%s3] %v131
    %s134 = smul.addr 4, 5
    %s135 = scalar_lea.vmem %s0, %s134
    %v136 = vld [vmem:[%s135] sm:%s3]
    %s137 = scalar_lea.vmem [#allocation0], 40
    %138 = vst [vmem:[%s137] sm:%s3] %v136
    %s139 = smul.addr 4, 4
    %s140 = scalar_lea.vmem %s0, %s139
    %v141 = vld [vmem:[%s140] sm:%s3]
    %s142 = scalar_lea.vmem [#allocation0], 32
    %143 = vst [vmem:[%s142] sm:%s3] %v141
    %s144 = smul.addr 4, 3
    %s145 = scalar_lea.vmem %s0, %s144
    %v146 = vld [vmem:[%s145] sm:%s3]
    %s147 = scalar_lea.vmem [#allocation0], 24
    %148 = vst [vmem:[%s147] sm:%s3] %v146
    %s149 = smul.addr 4, 2
    %s150 = scalar_lea.vmem %s0, %s149
    %v151 = vld [vmem:[%s150] sm:%s3]
    %s152 = scalar_lea.vmem [#allocation0], 16
    %153 = vst [vmem:[%s152] sm:%s3] %v151
    %s154 = scalar_lea.vmem %s0, 4
    %v155 = vld [vmem:[%s154] sm:%s3]
    %s156 = scalar_lea.vmem [#allocation0], 8
    %157 = vst [vmem:[%s156] sm:%s3] %v155
    %v158 = vld [vmem:[%s0] sm:%s3]
    %159 = vst [vmem:[#allocation0] sm:%s3] %v158
    %v160 = vld [vmem:[#allocation0] ss:$8 sm:$0xf]
    %v161 = vld [vmem:[#allocation0] ss:$8 sm:$0xf0]
    %vm162 = vcmask 1047556
    %v163 = vsel %vm162, %v161, %v160
    %vm164 = vcmask 261120
    %165 = vst.msk [vmem:[%s1] sm:$0xff] %vm164, %v163
    %s166 = scalar_lea.vmem [#allocation0], 64
    %v167 = vld [vmem:[%s166] ss:$8 sm:$0xf]
    %s168 = scalar_lea.vmem [#allocation0], 64
    %v169 = vld [vmem:[%s168] ss:$8 sm:$0xf0]
    %vm170 = vcmask 1047556
    %v171 = vsel %vm170, %v169, %v167
    %vm172 = vcmask 261120
    %s173 = scalar_lea.vmem %s1, 8
    %174 = vst.msk [vmem:[%s173] sm:$0xff] %vm172, %v171
    %s175 = scalar_lea.vmem [#allocation0], 128
    %v176 = vld [vmem:[%s175] ss:$8 sm:$0xf]
    %s177 = scalar_lea.vmem [#allocation0], 128
    %v178 = vld [vmem:[%s177] ss:$8 sm:$0xf0]
    %vm179 = vcmask 1047556
    %v180 = vsel %vm179, %v178, %v176
    %vm181 = vcmask 261120
    %s182 = scalar_lea.vmem %s1, 16
    %183 = vst.msk [vmem:[%s182] sm:$0xff] %vm181, %v180
    %s184 = scalar_lea.vmem [#allocation0], 192
    %v185 = vld [vmem:[%s184] ss:$8 sm:$0xf]
    %s186 = scalar_lea.vmem [#allocation0], 192
    %v187 = vld [vmem:[%s186] ss:$8 sm:$0xf0]
    %vm188 = vcmask 1047556
    %v189 = vsel %vm188, %v187, %v185
    %vm190 = vcmask 261120
    %s191 = scalar_lea.vmem %s1, 24
    %192 = vst.msk [vmem:[%s191] sm:$0xff] %vm190, %v189
    %s193 = scalar_lea.vmem [#allocation0], 3
    %v194 = vld [vmem:[%s193] ss:$8 sm:$0xf]
    %s195 = scalar_lea.vmem [#allocation0], 3
    %v196 = vld [vmem:[%s195] ss:$8 sm:$0xf0]
    %vm197 = vcmask 1047556
    %v198 = vsel %vm197, %v196, %v194
    %199 = vrot.lane.b32.xlu0 %v198, 96
    %v200 = vpop.permute.xlu0 %199
    %vm201 = vcmask 1048320
    %202 = vst.msk [vmem:[%s1] sm:$0xff] %vm201, %v200
    %s203 = scalar_lea.vmem [#allocation0], 67
    %v204 = vld [vmem:[%s203] ss:$8 sm:$0xf]
    %s205 = scalar_lea.vmem [#allocation0], 67
    %v206 = vld [vmem:[%s205] ss:$8 sm:$0xf0]
    %vm207 = vcmask 1047556
    %v208 = vsel %vm207, %v206, %v204
    %209 = vrot.lane.b32.xlu0 %v208, 96
    %v210 = vpop.permute.xlu0 %209
    %vm211 = vcmask 1048320
    %s212 = scalar_lea.vmem %s1, 8
    %213 = vst.msk [vmem:[%s212] sm:$0xff] %vm211, %v210
    %s214 = scalar_lea.vmem [#allocation0], 131
    %v215 = vld [vmem:[%s214] ss:$8 sm:$0xf]
    %s216 = scalar_lea.vmem [#allocation0], 131
    %v217 = vld [vmem:[%s216] ss:$8 sm:$0xf0]
    %vm218 = vcmask 1047556
    %v219 = vsel %vm218, %v217, %v215
    %220 = vrot.lane.b32.xlu0 %v219, 96
    %v221 = vpop.permute.xlu0 %220
    %vm222 = vcmask 1048320
    %s223 = scalar_lea.vmem %s1, 16
    %224 = vst.msk [vmem:[%s223] sm:$0xff] %vm222, %v221
    %s225 = scalar_lea.vmem [#allocation0], 195
    %v226 = vld [vmem:[%s225] ss:$8 sm:$0xf]
    %s227 = scalar_lea.vmem [#allocation0], 195
    %v228 = vld [vmem:[%s227] ss:$8 sm:$0xf0]
    %vm229 = vcmask 1047556
    %v230 = vsel %vm229, %v228, %v226
    %231 = vrot.lane.b32.xlu0 %v230, 96
    %v232 = vpop.permute.xlu0 %231
    %vm233 = vcmask 1048320
    %s234 = scalar_lea.vmem %s1, 24
    %235 = vst.msk [vmem:[%s234] sm:$0xff] %vm233, %v232
    %s236 = scalar_lea.vmem [#allocation0], 2
    %v237 = vld [vmem:[%s236] ss:$8 sm:$0xf]
    %s238 = scalar_lea.vmem [#allocation0], 2
    %v239 = vld [vmem:[%s238] ss:$8 sm:$0xf0]
    %vm240 = vcmask 1047556
    %v241 = vsel %vm240, %v239, %v237
    %242 = vrot.lane.b32.xlu0 %v241, 64
    %v243 = vpop.permute.xlu0 %242
    %vm244 = vcmask 785920
    %245 = vst.msk [vmem:[%s1] sm:$0xff] %vm244, %v243
    %s246 = scalar_lea.vmem [#allocation0], 66
    %v247 = vld [vmem:[%s246] ss:$8 sm:$0xf]
    %s248 = scalar_lea.vmem [#allocation0], 66
    %v249 = vld [vmem:[%s248] ss:$8 sm:$0xf0]
    %vm250 = vcmask 1047556
    %v251 = vsel %vm250, %v249, %v247
    %252 = vrot.lane.b32.xlu0 %v251, 64
    %v253 = vpop.permute.xlu0 %252
    %vm254 = vcmask 785920
    %s255 = scalar_lea.vmem %s1, 8
    %256 = vst.msk [vmem:[%s255] sm:$0xff] %vm254, %v253
    %s257 = scalar_lea.vmem [#allocation0], 130
    %v258 = vld [vmem:[%s257] ss:$8 sm:$0xf]
    %s259 = scalar_lea.vmem [#allocation0], 130
    %v260 = vld [vmem:[%s259] ss:$8 sm:$0xf0]
    %vm261 = vcmask 1047556
    %v262 = vsel %vm261, %v260, %v258
    %263 = vrot.lane.b32.xlu0 %v262, 64
    %v264 = vpop.permute.xlu0 %263
    %vm265 = vcmask 785920
    %s266 = scalar_lea.vmem %s1, 16
    %267 = vst.msk [vmem:[%s266] sm:$0xff] %vm265, %v264
    %s268 = scalar_lea.vmem [#allocation0], 194
    %v269 = vld [vmem:[%s268] ss:$8 sm:$0xf]
    %s270 = scalar_lea.vmem [#allocation0], 194
    %v271 = vld [vmem:[%s270] ss:$8 sm:$0xf0]
    %vm272 = vcmask 1047556
    %v273 = vsel %vm272, %v271, %v269
    %274 = vrot.lane.b32.xlu0 %v273, 64
    %v275 = vpop.permute.xlu0 %274
    %vm276 = vcmask 785920
    %s277 = scalar_lea.vmem %s1, 24
    %278 = vst.msk [vmem:[%s277] sm:$0xff] %vm276, %v275
    %s279 = scalar_lea.vmem [#allocation0], 1
    %v280 = vld [vmem:[%s279] ss:$8 sm:$0xf]
    %s281 = scalar_lea.vmem [#allocation0], 1
    %v282 = vld [vmem:[%s281] ss:$8 sm:$0xf0]
    %vm283 = vcmask 1047556
    %v284 = vsel %vm283, %v282, %v280
    %285 = vrot.lane.b32.xlu0 %v284, 32
    %v286 = vpop.permute.xlu0 %285
    %vm287 = vcmask 523520
    %288 = vst.msk [vmem:[%s1] sm:$0xff] %vm287, %v286
    %s289 = scalar_lea.vmem [#allocation0], 65
    %v290 = vld [vmem:[%s289] ss:$8 sm:$0xf]
    %s291 = scalar_lea.vmem [#allocation0], 65
    %v292 = vld [vmem:[%s291] ss:$8 sm:$0xf0]
    %vm293 = vcmask 1047556
    %v294 = vsel %vm293, %v292, %v290
    %295 = vrot.lane.b32.xlu0 %v294, 32
    %v296 = vpop.permute.xlu0 %295
    %vm297 = vcmask 523520
    %s298 = scalar_lea.vmem %s1, 8
    %299 = vst.msk [vmem:[%s298] sm:$0xff] %vm297, %v296
    %s300 = scalar_lea.vmem [#allocation0], 129
    %v301 = vld [vmem:[%s300] ss:$8 sm:$0xf]
    %s302 = scalar_lea.vmem [#allocation0], 129
    %v303 = vld [vmem:[%s302] ss:$8 sm:$0xf0]
    %vm304 = vcmask 1047556
    %v305 = vsel %vm304, %v303, %v301
    %306 = vrot.lane.b32.xlu0 %v305, 32
    %v307 = vpop.permute.xlu0 %306
    %vm308 = vcmask 523520
    %s309 = scalar_lea.vmem %s1, 16
    %310 = vst.msk [vmem:[%s309] sm:$0xff] %vm308, %v307
    %s311 = scalar_lea.vmem [#allocation0], 193
    %v312 = vld [vmem:[%s311] ss:$8 sm:$0xf]
    %s313 = scalar_lea.vmem [#allocation0], 193
    %v314 = vld [vmem:[%s313] ss:$8 sm:$0xf0]
    %vm315 = vcmask 1047556
    %v316 = vsel %vm315, %v314, %v312
    %317 = vrot.lane.b32.xlu0 %v316, 32
    %v318 = vpop.permute.xlu0 %317
    %vm319 = vcmask 523520
    %s320 = scalar_lea.vmem %s1, 24
    %321 = vst.msk [vmem:[%s320] sm:$0xff] %vm319, %v318

// kernel: rte_forward.1
$region0: #{rte_forward.1}
  #allocation0 [shape = 'u32[]', space=smem, size = 0x4, offset = 0x4, fixed_abs, tag = 'smem constant byte address 0x4 - core index']
  #allocation1 [shape = 'u32[144,128]{1,0:T(1,128)}', space=vmem, size = 0x12000, scoped, tag = 'internal scratch']
  #allocation2 [shape = 'f32[3,32]{1,0:T(4,128)}', space=vmem, size = 0x800, scoped, tag = 'scratch operand']
  #allocation3 [shape = 'f32[3,128]{1,0:T(4,128)}', space=vmem, size = 0x800, scoped, tag = 'scratch operand']
  #allocation4 [shape = 's32[1]{0}', space=sflag, size = 0x4, scoped, tag = 'scoped memory for rte_forward.1']
  #allocation5 [shape = 'u8[512]{0}', space=smem, size = 0x200, scoped, tag = 'prefetched SMEM operand 0']
  %s0 = inlined_call_operand.vmem [shape: s32[6], index: 0, kind: input, shape index: {}]
  %s1 = inlined_call_operand.vmem [shape: f32[100,32], index: 1, kind: input, shape index: {}]
  %s2 = inlined_call_operand.vmem [shape: f32[32,128], index: 2, kind: input, shape index: {}]
  %s3 = inlined_call_operand.vmem [shape: f32[1,128], index: 3, kind: input, shape index: {}]
  %s4 = inlined_call_operand.vmem [shape: f32[6,64,128], index: 4, kind: input, shape index: {}]
  %s5 = inlined_call_operand.vmem [shape: f32[6,64,128], index: 5, kind: output, shape index: {}]
  %s6 = sld [smem:[#allocation0]]
  $region53: #{rte_forward.1} parent=0
    _
  %s8 = ssub.s32 1, %s6
  %s9 = scalar_select 0, %s8, %s6
  %s10 = sshll.u32 %s0, 4
  %s11 = int_to_ptr.vmem [resolvable:$true] %s10
  %13 = dma.vmem_to_smem %s11, 16, [#allocation5], [#allocation4]
  %14 = dma.done [#allocation4], 16
  %15 = sfence
  loop: start=0, step=1, limit=4
  $region2: #{rte_forward.1} parent=0 // loop_pre_header
    _
  $region3: #{rte_forward.1} parent=0 // loop_header
    %s17 = sphi 0, %s21
    %p18 = scmp.ge.s32.totalorder %s17, 4
    %s24 = sphi 0, %s36
    %s25 = sphi 0, %s32
    %s26 = sphi 0, %s24
    %s27 = sphi 0, %s25
    %s28 = sphi 0, %s26
    %s29 = sphi 0, %s27
    %s37 = sphi 0, %s37
    %s39 = sphi 0, %s37
    %s40 = sphi 0, %s39
    %s54 = sphi 0, %s40
    %s58 = sphi 0, %s58
    %s60 = sphi 0, %s58
    %s61 = sphi 0, %s60
    %s75 = sphi 0, %s61
    %s79 = sphi 0, %s79
    %s81 = sphi 0, %s79
    %s82 = sphi 0, %s81
    %s96 = sphi 0, %s82
    %s104 = sphi 0, %s106
    %s107 = sphi 0, %s104
    %s108 = sphi 0, %s107
    %s124 = sphi 0, %s108
    %s132 = sphi 0, %s134
    %s135 = sphi 0, %s132
    %s136 = sphi 0, %s135
    %s152 = sphi 0, %s136
  $region4: #{rte_forward.1} parent=0 // loop_header_branch
    %20 = sbr.rel (%p18) target = $region8
  $region5: #{rte_forward.1} parent=0 // loop_body
    %s22 = ssub.s32 %s17, 1
    %s23 = ssub.s32 %s17, 2
    %s30 = sadd.s32 1, %s25
    %p31 = scmp.ge.s32.totalorder %s30, 1
    %s32 = scalar_select %p31, 0, %s30
    %s33 = sadd.s32 1, %s24
    %s34 = scalar_select %p31, %s33, %s24
    %p35 = scmp.ge.s32.totalorder %s34, 2
    %s36 = scalar_select %p35, 0, %s34
    %s38 = sadd.s32 %s37, 1
    %p41 = scmp.eq.s32.totalorder %s17, 1
    %p42 = scmp.ne.s32.totalorder %s37, %s39
    %p43 = scmp.eq.s32.totalorder %s17, 0
    %p44 = por %p42, %p43
    %p45 = scmp.ne.s32.totalorder %s37, %s39
    %p46 = scmp.eq.s32.totalorder %s22, 1
    %p47 = por %p45, %p46
    %p48 = scmp.ne.s32.totalorder %s39, %s40
    %p49 = scmp.eq.s32.totalorder %s22, 0
    %p50 = por %p48, %p49
    %p51 = scmp.ne.s32.totalorder %s39, %s40
    %p52 = scmp.eq.s32.totalorder %s23, 1
    %p53 = por %p51, %p52
    %p55 = scmp.ne.s32.totalorder %s40, %s54
    %p56 = scmp.eq.s32.totalorder %s23, 0
    %p57 = por %p55, %p56
    %s59 = sadd.s32 %s58, 1
    %p62 = scmp.eq.s32.totalorder %s17, 1
    %p63 = scmp.ne.s32.totalorder %s58, %s60
    %p64 = scmp.eq.s32.totalorder %s17, 0
    %p65 = por %p63, %p64
    %p66 = scmp.ne.s32.totalorder %s58, %s60
    %p67 = scmp.eq.s32.totalorder %s22, 1
    %p68 = por %p66, %p67
    %p69 = scmp.ne.s32.totalorder %s60, %s61
    %p70 = scmp.eq.s32.totalorder %s22, 0
    %p71 = por %p69, %p70
    %p72 = scmp.ne.s32.totalorder %s60, %s61
    %p73 = scmp.eq.s32.totalorder %s23, 1
    %p74 = por %p72, %p73
    %p76 = scmp.ne.s32.totalorder %s61, %s75
    %p77 = scmp.eq.s32.totalorder %s23, 0
    %p78 = por %p76, %p77
    %s80 = sadd.s32 %s79, 1
    %p83 = scmp.eq.s32.totalorder %s17, 1
    %p84 = scmp.ne.s32.totalorder %s79, %s81
    %p85 = scmp.eq.s32.totalorder %s17, 0
    %p86 = por %p84, %p85
    %p87 = scmp.ne.s32.totalorder %s79, %s81
    %p88 = scmp.eq.s32.totalorder %s22, 1
    %p89 = por %p87, %p88
    %p90 = scmp.ne.s32.totalorder %s81, %s82
    %p91 = scmp.eq.s32.totalorder %s22, 0
    %p92 = por %p90, %p91
    %p93 = scmp.ne.s32.totalorder %s81, %s82
    %p94 = scmp.eq.s32.totalorder %s23, 1
    %p95 = por %p93, %p94
    %p97 = scmp.ne.s32.totalorder %s82, %s96
    %p98 = scmp.eq.s32.totalorder %s23, 0
    %p99 = por %p97, %p98
    %s100 = ssub.s32 %s24, %s36
    %s101 = ssub.s32 %s25, %s32
    %s102 = sor.u32 %s100, %s101
    %p103 = scmp.eq.s32.totalorder %s102, 0
    %s105 = sadd.s32 %s104, 1
    %s106 = scalar_select %p103, %s104, %s105
    %p109 = pneg %p103
    %p110 = scmp.eq.s32.totalorder %s17, 1
    %p111 = por %p109, %p110
    %p112 = scmp.ne.s32.totalorder %s104, %s107
    %p113 = scmp.eq.s32.totalorder %s17, 0
    %p114 = por %p112, %p113
    %p115 = scmp.ne.s32.totalorder %s104, %s107
    %p116 = scmp.eq.s32.totalorder %s22, 1
    %p117 = por %p115, %p116
    %p118 = scmp.ne.s32.totalorder %s107, %s108
    %p119 = scmp.eq.s32.totalorder %s22, 0
    %p120 = por %p118, %p119
    %p121 = scmp.ne.s32.totalorder %s107, %s108
    %p122 = scmp.eq.s32.totalorder %s23, 1
    %p123 = por %p121, %p122
    %p125 = scmp.ne.s32.totalorder %s108, %s124
    %p126 = scmp.eq.s32.totalorder %s23, 0
    %p127 = por %p125, %p126
    %s128 = ssub.s32 %s24, %s36
    %s129 = ssub.s32 %s25, %s32
    %s130 = sor.u32 %s128, %s129
    %p131 = scmp.eq.s32.totalorder %s130, 0
    %s133 = sadd.s32 %s132, 1
    %s134 = scalar_select %p131, %s132, %s133
    %p137 = pneg %p131
    %p138 = scmp.eq.s32.totalorder %s17, 1
    %p139 = por %p137, %p138
    %p140 = scmp.ne.s32.totalorder %s132, %s135
    %p141 = scmp.eq.s32.totalorder %s17, 0
    %p142 = por %p140, %p141
    %p143 = scmp.ne.s32.totalorder %s132, %s135
    %p144 = scmp.eq.s32.totalorder %s22, 1
    %p145 = por %p143, %p144
    %p146 = scmp.ne.s32.totalorder %s135, %s136
    %p147 = scmp.eq.s32.totalorder %s22, 0
    %p148 = por %p146, %p147
    %p149 = scmp.ne.s32.totalorder %s135, %s136
    %p150 = scmp.eq.s32.totalorder %s23, 1
    %p151 = por %p149, %p150
    %p153 = scmp.ne.s32.totalorder %s136, %s152
    %p154 = scmp.eq.s32.totalorder %s23, 0
    %p155 = por %p153, %p154
    %p156 = scmp.le.s32.totalorder 1, %s17
    %p157 = scmp.lt.s32.totalorder %s17, 3
    %p158 = pnand %p156, %p157
    %p159 = pneg %p158
    // Predicated region
    $region9: #{rte_forward.1} parent=5 // pred_check
      _
    $region10: #{rte_forward.1} parent=5 // pred_check_branch
      %161 = sbr.rel (%p158) target = $region12
    $region11: #{rte_forward.1} parent=5 // pred_region
      %s162 = ssub.s32 %s17, 1
      // Predicated region
      $region13: #{rte_forward.1} parent=11 // pred_check
        %p163 = pneg %p50
      $region14: #{rte_forward.1} parent=11 // pred_check_branch
        %165 = sbr.rel (%p163) target = $region16
      $region15: #{rte_forward.1} parent=11 // pred_region
        _
      $region16: #{rte_forward.1} parent=11 // pred_fallthru
        _
      // Predicated region
      $region17: #{rte_forward.1} parent=11 // pred_check
        %p166 = pneg %p71
      $region18: #{rte_forward.1} parent=11 // pred_check_branch
        %168 = sbr.rel (%p166) target = $region20
      $region19: #{rte_forward.1} parent=11 // pred_region
        _
      $region20: #{rte_forward.1} parent=11 // pred_fallthru
        _
      // Predicated region
      $region21: #{rte_forward.1} parent=11 // pred_check
        %p169 = pneg %p92
      $region22: #{rte_forward.1} parent=11 // pred_check_branch
        %171 = sbr.rel (%p169) target = $region24
      $region23: #{rte_forward.1} parent=11 // pred_region
        _
      $region24: #{rte_forward.1} parent=11 // pred_fallthru
        _
    $region12: #{rte_forward.1} parent=5 // pred_fallthru
      _
    %p172 = scmp.lt.s32.totalorder %s17, 2
    // Predicated region
    $region25: #{rte_forward.1} parent=5 // pred_check
      %p173 = pneg %p172
    $region26: #{rte_forward.1} parent=5 // pred_check_branch
      %175 = sbr.rel (%p173) target = $region28
    $region27: #{rte_forward.1} parent=5 // pred_region
      // Predicated region
      $region29: #{rte_forward.1} parent=27 // pred_check
        %p176 = pneg %p114
      $region30: #{rte_forward.1} parent=27 // pred_check_branch
        %178 = sbr.rel (%p176) target = $region32
      $region31: #{rte_forward.1} parent=27 // pred_region
        %s179 = smul.u32 3, %s24
        %s180 = smul.u32 8, %s25
        %p181 = scmp.lt.s32.totalorder %s179, 5
        %s182 = scalar_select %p181, %s179, 5
        %p183 = scmp.lt.s32.totalorder %s180, 7
        %s184 = scalar_select %p183, %s180, 7
        %s185 = smul.addr %s182, 8
        %s186 = sadd.s32 %s184, %s185
        %s187 = smul.addr %s186, 8
        %s188 = scalar_lea.vmem %s4, %s187
        %s189 = smul.u32 3, %s24
        %s190 = smul.u32 8, %s25
      $region32: #{rte_forward.1} parent=27 // pred_fallthru
        _
    $region28: #{rte_forward.1} parent=5 // pred_fallthru
      _
    %p191 = scmp.le.s32.totalorder 1, %s17
    %p192 = scmp.lt.s32.totalorder %s17, 3
    %p193 = pnand %p191, %p192
    %p194 = pneg %p193
    // Predicated region
    $region33: #{rte_forward.1} parent=5 // pred_check
      _
    $region34: #{rte_forward.1} parent=5 // pred_check_branch
      %196 = sbr.rel (%p193) target = $region36
    $region35: #{rte_forward.1} parent=5 // pred_region
      %s197 = ssub.s32 %s17, 1
      %p198 = pneg %p50
      %p199 = pneg %p47
      %p200 = pneg %p71
      %p201 = pneg %p68
      %p202 = pneg %p92
      %p203 = pneg %p89
      %s204 = smul.u32 3, %s26
      %s205 = smul.u32 8, %s27
      %p206 = scmp.lt.s32.totalorder %s204, 5
      %s207 = scalar_select %p206, %s204, 5
      %p208 = scmp.lt.s32.totalorder %s205, 7
      %s209 = scalar_select %p208, %s205, 7
      %s210 = smul.addr %s207, 8
      %s211 = sadd.s32 %s209, %s210
      %s212 = smul.addr %s211, 8
      %s213 = scalar_lea.vmem %s4, %s212
      %p214 = pneg %p120
      %p215 = pneg %p117
      %p216 = pneg %p148
      %p217 = pneg %p145
      %s218 = smul.u32 3, %s26
      %s219 = smul.u32 8, %s27
      %p220 = scmp.lt.s32.totalorder %s218, 5
      %s221 = scalar_select %p220, %s218, 5
      %p222 = scmp.lt.s32.totalorder %s219, 7
      %s223 = scalar_select %p222, %s219, 7
      %s224 = smul.addr %s221, 8
      %s225 = sadd.s32 %s223, %s224
      %s226 = smul.addr %s225, 8
      %s227 = scalar_lea.vmem %s5, %s226
      %s228 = smul.u32 3, %s26
      %s229 = smul.u32 8, %s27
      %p230 = scmp.lt.s32.totalorder %s228, 5
      %s231 = scalar_select %p230, %s228, 5
      %p232 = scmp.lt.s32.totalorder %s229, 7
      %s233 = scalar_select %p232, %s229, 7
      %s234 = smul.addr %s231, 8
      %s235 = sadd.s32 %s233, %s234
      %s236 = smul.addr %s235, 8
      %s237 = scalar_lea.vmem %s4, %s236
      %s238 = smul.u32 3, %s26
      %s239 = smul.u32 8, %s27
      %s240 = smul.u32 3, %s26
      %s241 = smul.u32 8, %s27
      %p242 = scmp.lt.s32.totalorder %s240, 5
      %s243 = scalar_select %p242, %s240, 5
      %p244 = scmp.lt.s32.totalorder %s241, 7
      %s245 = scalar_select %p244, %s241, 7
      %s246 = smul.addr %s243, 8
      %s247 = sadd.s32 %s245, %s246
      %s248 = smul.addr %s247, 8
      %s249 = scalar_lea.vmem %s5, %s248
      %s250 = smul.u32 3, %s26
      %s251 = smul.u32 8, %s27
      %p252 = scmp.eq.s32.totalorder %s27, 0
      // Predicated region
      $region37: #{rte_forward.1} parent=35 // pred_check
        %p253 = pneg %p252
      $region38: #{rte_forward.1} parent=35 // pred_check_branch
        %255 = sbr.rel (%p253) target = $region40
      $region39: #{rte_forward.1} parent=35 // pred_region
        %s256 = smul.u32 %s26, 3
        %s257 = sld [smem:[#allocation5 + %s256]]
        %s258 = scalar_lea.vmem %s1, %s257
        %v259 = vld [vmem:[%s258] sm:$0x1]
        %vm260 = vcmask 253952
        %261 = vst.msk [vmem:[#allocation2] sm:$0x1] %vm260, %v259
        %s262 = sadd.s32 %s256, 1
        %s263 = sld [smem:[#allocation5 + %s262]]
        %s264 = scalar_lea.vmem %s1, %s263
        %v265 = vld [vmem:[%s264] sm:$0x1]
        %266 = vst.msk [vmem:[#allocation2 + $0x1] sm:$0x1] %vm260, %v265
        %s267 = sadd.s32 %s256, 2
        %s268 = sld [smem:[#allocation5 + %s267]]
        %s269 = scalar_lea.vmem %s1, %s268
        %v270 = vld [vmem:[%s269] sm:$0x1]
        %271 = vst.msk [vmem:[#allocation2 + $0x2] sm:$0x1] %vm260, %v270
        %v272 = vld [vmem:[#allocation2] sm:$0x7]
        %v273 = vld [vmem:[%s2] sm:$0xff]
        %v274 = vld [vmem:[%s2 + $0x8] sm:$0xff]
        %v275 = vld [vmem:[%s2 + $0x10] sm:$0xff]
        %v276 = vld [vmem:[%s2 + $0x18] sm:$0xff]
        %v277 = vld [vmem:[%s3] sm:$0x1]
        %v279 = vlaneseq
        %v280 = vshrl.u32 %v279, 7
        %v281 = vsub.s32 0, %v280
        %v282 = vrot.slane %v277, %v281
        %vm284 = vcmask 261120
        %v286 = vsel %vm284, %v272, 0
        %288 = vmatprep.subr.mxu0 0.0
        %289 = vmatpush1.msra.mxu0 %v273
        %290 = vmatprep.subr.mxu0 0.0
        %291 = vmatpush1.msra.mxu0 %v274
        %292 = vmatprep.subr.mxu0 0.0
        %293 = vmatpush1.msra.mxu0 %v275
        %294 = vmatprep.subr.mxu0 0.0
        %295 = vmatpush1.msra.mxu0 %v276
        %296 = vmatprep.subr.mxu0 0.0
        %297 = vmatpush1.msra.mxu0 0.0
        %298 = vmatprep.subr.mxu0 0.0
        %299 = vmatpush1.msra.mxu0 0.0
        %300 = vmatprep.subr.mxu0 0.0
        %301 = vmatpush1.msra.mxu0 0.0
        %302 = vmatprep.subr.mxu0 0.0
        %303 = vmatpush1.msra.mxu0 0.0
        %304 = vmatprep.subr.mxu0 0.0
        %305 = vmatpush1.msra.mxu0 0.0
        %306 = vmatprep.subr.mxu0 0.0
        %307 = vmatpush1.msra.mxu0 0.0
        %308 = vmatprep.subr.mxu0 0.0
        %309 = vmatpush1.msra.mxu0 0.0
        %310 = vmatprep.subr.mxu0 0.0
        %311 = vmatpush1.msra.mxu0 0.0
        %312 = vmatprep.subr.mxu0 0.0
        %313 = vmatpush1.msra.mxu0 0.0
        %314 = vmatprep.subr.mxu0 0.0
        %315 = vmatpush1.msra.mxu0 0.0
        %316 = vmatprep.subr.mxu0 0.0
        %317 = vmatpush1.msra.mxu0 0.0
        %318 = vmatprep.subr.mxu0 0.0
        %319 = vmatpush1.msra.mxu0 0.0
        %320 = vmatprep.subr.mxu0 0.0
        %321 = vmatpush1.msra.mxu0 0.0
        %322 = vmatprep.subr.mxu0 0.0
        %323 = vmatpush1.msra.mxu0 0.0
        %324 = vmatprep.subr.mxu0 0.0
        %325 = vmatpush1.msra.mxu0 0.0
        %326 = vmatprep.subr.mxu0 0.0
        %327 = vmatpush1.msra.mxu0 0.0
        %328 = vmatprep.subr.mxu0 0.0
        %329 = vmatpush1.msra.mxu0 0.0
        %330 = vmatprep.subr.mxu0 0.0
        %331 = vmatpush1.msra.mxu0 0.0
        %332 = vmatprep.subr.mxu0 0.0
        %333 = vmatpush1.msra.mxu0 0.0
        %334 = vmatprep.subr.mxu0 0.0
        %335 = vmatpush1.msra.mxu0 0.0
        %336 = vmatprep.subr.mxu0 0.0
        %337 = vmatpush1.msra.mxu0 0.0
        %338 = vmatprep.subr.mxu0 0.0
        %339 = vmatpush1.msra.mxu0 0.0
        %340 = vmatprep.subr.mxu0 0.0
        %341 = vmatpush1.msra.mxu0 0.0
        %342 = vmatprep.subr.mxu0 0.0
        %343 = vmatpush1.msra.mxu0 0.0
        %344 = vmatprep.subr.mxu0 0.0
        %345 = vmatpush1.msra.mxu0 0.0
        %346 = vmatprep.subr.mxu0 0.0
        %347 = vmatpush1.msra.mxu0 0.0
        %348 = vmatprep.subr.mxu0 0.0
        %349 = vmatpush1.msra.mxu0 0.0
        %350 = vmatprep.subr.mxu0 0.0
        %351 = vmatpush1.msra.mxu0 0.0
        %352 = vmatprep.mubr.f32.mxu0 0.0
        %353 = vmatmul.mubr.f32.gmra.mrb[0].mxu0 %v286
        %v354 = vpop.f32.mrb[0].mxu0
        %v355 = vadd.f32 %v282, %v354
        %v356 = vpop.f32.mrb[0].mxu0
        %357 = vdwg.mxu0
        %358 = vst [vmem:[#allocation3] sm:$0x7] %v355
      $region40: #{rte_forward.1} parent=35 // pred_fallthru
        _
      %v359 = vld [vmem:[#allocation3] sm:$0x7]
      %v360 = vld [vmem:[%s237] sm:$0xff]
      %v361 = vld [vmem:[%s237 + $0x8] sm:$0xff]
      %v362 = vld [vmem:[%s237 + $0x10] sm:$0xff]
      %v363 = vld [vmem:[%s237 + $0x18] sm:$0xff]
      %v364 = vld [vmem:[%s237 + $0x20] sm:$0xff]
      %v365 = vld [vmem:[%s237 + $0x28] sm:$0xff]
      %v366 = vld [vmem:[%s237 + $0x30] sm:$0xff]
      %v367 = vld [vmem:[%s237 + $0x38] sm:$0xff]
      %v368 = vld [vmem:[%s237 + $0x40] sm:$0xff]
      %v369 = vld [vmem:[%s237 + $0x48] sm:$0xff]
      %v370 = vld [vmem:[%s237 + $0x50] sm:$0xff]
      %v371 = vld [vmem:[%s237 + $0x58] sm:$0xff]
      %v372 = vld [vmem:[%s237 + $0x60] sm:$0xff]
      %v373 = vld [vmem:[%s237 + $0x68] sm:$0xff]
      %v374 = vld [vmem:[%s237 + $0x70] sm:$0xff]
      %v375 = vld [vmem:[%s237 + $0x78] sm:$0xff]
      %v376 = vld [vmem:[%s237 + $0x80] sm:$0xff]
      %v377 = vld [vmem:[%s237 + $0x88] sm:$0xff]
      %v378 = vld [vmem:[%s237 + $0x90] sm:$0xff]
      %v379 = vld [vmem:[%s237 + $0x98] sm:$0xff]
      %v380 = vld [vmem:[%s237 + $0xa0] sm:$0xff]
      %v381 = vld [vmem:[%s237 + $0xa8] sm:$0xff]
      %v382 = vld [vmem:[%s237 + $0xb0] sm:$0xff]
      %v383 = vld [vmem:[%s237 + $0xb8] sm:$0xff]
      %v386 = vunpack.c.l.s4 1966171168
      %v387 = vunpack.c.0.s8 %v386
      %v388 = vlaneseq
      %v389 = vshrl.u32 %v388, 7
      %v390 = vsub.s32 %v387, %v389
      %v391 = vrot.slane %v359, %v390
      %v392 = vcombine.high %v391, %v391
      %v394 = vunpack.c.l.s4 1966171168
      %v395 = vunpack.c.0.s8 %v394
      %v396 = vlaneseq
      %v397 = vshrl.u32 %v396, 7
      %v398 = vsub.s32 %v395, %v397
      %v399 = vrot.slane %v391, %v398
      %v401 = vunpack.c.l.s4 1966171168
      %v402 = vunpack.c.0.s8 %v401
      %v403 = vlaneseq
      %v404 = vshrl.u32 %v403, 7
      %v405 = vsub.s32 %v402, %v404
      %v406 = vrot.slane %v392, %v405
      %v407 = vcombine.high %v399, %v399
      %v408 = vlaneseq
      %v409 = vshrl.u32 %v408, 7
      %v410 = vsub.s32 0, %v409
      %v411 = vrot.slane %v399, %v410
      %v412 = vlaneseq
      %v413 = vshrl.u32 %v412, 7
      %v414 = vsub.s32 0, %v413
      %v415 = vrot.slane %v406, %v414
      %v416 = vlaneseq
      %v417 = vshrl.u32 %v416, 7
      %v418 = vsub.s32 0, %v417
      %v419 = vrot.slane %v407, %v418
      %v423 = vadd.f32 %v360, %v411
      %v424 = vadd.f32 %v361, %v411
      %v425 = vadd.f32 %v362, %v411
      %v426 = vadd.f32 %v363, %v411
      %v427 = vadd.f32 %v364, %v411
      %v428 = vadd.f32 %v365, %v411
      %v429 = vadd.f32 %v366, %v411
      %v430 = vadd.f32 %v367, %v411
      %v431 = vadd.f32 %v368, %v415
      %v432 = vadd.f32 %v369, %v415
      %v433 = vadd.f32 %v370, %v415
      %v434 = vadd.f32 %v371, %v415
      %v435 = vadd.f32 %v372, %v415
      %v436 = vadd.f32 %v373, %v415
      %v437 = vadd.f32 %v374, %v415
      %v438 = vadd.f32 %v375, %v415
      %v439 = vadd.f32 %v376, %v419
      %v440 = vadd.f32 %v377, %v419
      %v441 = vadd.f32 %v378, %v419
      %v442 = vadd.f32 %v379, %v419
      %v443 = vadd.f32 %v380, %v419
      %v444 = vadd.f32 %v381, %v419
      %v445 = vadd.f32 %v382, %v419
      %v446 = vadd.f32 %v383, %v419
      %447 = vst [vmem:[%s249] sm:$0xff] %v423
      %448 = vst [vmem:[%s249 + $0x8] sm:$0xff] %v424
      %449 = vst [vmem:[%s249 + $0x10] sm:$0xff] %v425
      %450 = vst [vmem:[%s249 + $0x18] sm:$0xff] %v426
      %451 = vst [vmem:[%s249 + $0x20] sm:$0xff] %v427
      %452 = vst [vmem:[%s249 + $0x28] sm:$0xff] %v428
      %453 = vst [vmem:[%s249 + $0x30] sm:$0xff] %v429
      %454 = vst [vmem:[%s249 + $0x38] sm:$0xff] %v430
      %455 = vst [vmem:[%s249 + $0x40] sm:$0xff] %v431
      %456 = vst [vmem:[%s249 + $0x48] sm:$0xff] %v432
      %457 = vst [vmem:[%s249 + $0x50] sm:$0xff] %v433
      %458 = vst [vmem:[%s249 + $0x58] sm:$0xff] %v434
      %459 = vst [vmem:[%s249 + $0x60] sm:$0xff] %v435
      %460 = vst [vmem:[%s249 + $0x68] sm:$0xff] %v436
      %461 = vst [vmem:[%s249 + $0x70] sm:$0xff] %v437
      %462 = vst [vmem:[%s249 + $0x78] sm:$0xff] %v438
      %463 = vst [vmem:[%s249 + $0x80] sm:$0xff] %v439
      %464 = vst [vmem:[%s249 + $0x88] sm:$0xff] %v440
      %465 = vst [vmem:[%s249 + $0x90] sm:$0xff] %v441
      %466 = vst [vmem:[%s249 + $0x98] sm:$0xff] %v442
      %467 = vst [vmem:[%s249 + $0xa0] sm:$0xff] %v443
      %468 = vst [vmem:[%s249 + $0xa8] sm:$0xff] %v444
      %469 = vst [vmem:[%s249 + $0xb0] sm:$0xff] %v445
      %470 = vst [vmem:[%s249 + $0xb8] sm:$0xff] %v446
      %s471 = smul.u32 3, %s26
      %s472 = smul.u32 8, %s27
      %p473 = scmp.lt.s32.totalorder %s471, 5
      %s474 = scalar_select %p473, %s471, 5
      %p475 = scmp.lt.s32.totalorder %s472, 7
      %s476 = scalar_select %p475, %s472, 7
      %s477 = smul.addr %s474, 8
      %s478 = sadd.s32 %s476, %s477
      %s479 = smul.addr %s478, 8
      %s480 = scalar_lea.vmem %s5, %s479
      // Predicated region
      $region41: #{rte_forward.1} parent=35 // pred_check
        %p481 = pneg %p145
      $region42: #{rte_forward.1} parent=35 // pred_check_branch
        %483 = sbr.rel (%p481) target = $region44
      $region43: #{rte_forward.1} parent=35 // pred_region
        %s484 = smul.u32 3, %s26
        %s485 = smul.u32 8, %s27
      $region44: #{rte_forward.1} parent=35 // pred_fallthru
        _
    $region36: #{rte_forward.1} parent=5 // pred_fallthru
      _
    %p486 = scmp.le.s32.totalorder 2, %s17
    // Predicated region
    $region45: #{rte_forward.1} parent=5 // pred_check
      %p487 = pneg %p486
    $region46: #{rte_forward.1} parent=5 // pred_check_branch
      %489 = sbr.rel (%p487) target = $region48
    $region47: #{rte_forward.1} parent=5 // pred_region
      %s490 = ssub.s32 %s17, 2
      // Predicated region
      $region49: #{rte_forward.1} parent=47 // pred_check
        %p491 = pneg %p151
      $region50: #{rte_forward.1} parent=47 // pred_check_branch
        %493 = sbr.rel (%p491) target = $region52
      $region51: #{rte_forward.1} parent=47 // pred_region
        %s494 = smul.u32 3, %s28
        %s495 = smul.u32 8, %s29
        %p496 = scmp.lt.s32.totalorder %s494, 5
        %s497 = scalar_select %p496, %s494, 5
        %p498 = scmp.lt.s32.totalorder %s495, 7
        %s499 = scalar_select %p498, %s495, 7
        %s500 = smul.addr %s497, 8
        %s501 = sadd.s32 %s499, %s500
        %s502 = smul.addr %s501, 8
        %s503 = scalar_lea.vmem %s5, %s502
      $region52: #{rte_forward.1} parent=47 // pred_fallthru
        _
    $region48: #{rte_forward.1} parent=5 // pred_fallthru
      _
  $region6: #{rte_forward.1} parent=0 // loop_footer
    %s21 = sadd.s32 1, %s17
  $region7: #{rte_forward.1} parent=0 // loop_footer_branch
    %16 = sbr.rel target = $region3
  $region8: #{rte_forward.1} parent=0 // loop_exit
    _

</llo_original>
